<compile_context>
chip_gen: v5e
topology: v5e:2x2
jax: 0.10.0
libtpu: 0.0.40
codegen_flags: <defaults>
</compile_context>

<pallas_src>
import functools

import jax
import jax.numpy as jnp
from jax.experimental import pallas as pl
from jax.experimental.pallas import tpu as pltpu

_LANES = 128
_SUBLANES = 8
_CHUNK_ROWS = 128                     # rows folded per fori_loop iteration
_TARGET_TILE_BYTES = 2 * 1024 * 1024  # per-input tile; x2 inputs x2 buffers = 8 MiB VMEM
_SMALL_N_FASTPATH = 1 << 20           # below this, a fused XLA reduction wins


def _rmse_sumsq_kernel(x_ref, y_ref, out_ref, *, tm, valid_rows, need_mask):
    """Accumulates sum((x - y)^2) of this tile into a resident (8,128) f32 block."""
    j = pl.program_id(0)

    # Zero the resident lane-wise accumulator at the start of the sweep.
    @pl.when(j == 0)
    def _():
        out_ref[...] = jnp.zeros_like(out_ref)

    n_chunks = tm // _CHUNK_ROWS

    def tile_sumsq(masked):
        tile_row0 = j * tm

        def chunk_body(c, acc):
            r = pl.multiple_of(c * _CHUNK_ROWS, _CHUNK_ROWS)
            d = (x_ref[pl.ds(r, _CHUNK_ROWS), :].astype(jnp.float32)
                 - y_ref[pl.ds(r, _CHUNK_ROWS), :].astype(jnp.float32))
            dd = d * d
            if masked:
                # Rows past valid_rows hold undefined VMEM data (ragged last
                # block); select-to-zero does not propagate their NaN/Inf.
                row_ids = (tile_row0 + r
                           + jax.lax.broadcasted_iota(
                               jnp.int32, (_CHUNK_ROWS, _LANES), 0))
                dd = jnp.where(row_ids < valid_rows, dd, 0.0)
            # Fold the (128,128) chunk down to one (8,128) vreg with VPU adds
            # only (no XLU, small live set -> no spills even at TM=4096+).
            return acc + dd.reshape(
                _CHUNK_ROWS // _SUBLANES, _SUBLANES, _LANES).sum(axis=0)

        acc = jax.lax.fori_loop(
            0, n_chunks, chunk_body,
            jnp.zeros((_SUBLANES, _LANES), jnp.float32))
        out_ref[...] += acc

    if need_mask:
        # Only the last tile can be ragged; keep the iota/compare/select off
        # the hot path of every other tile (pl.when cold paths are free).
        last = pl.num_programs(0) - 1

        @pl.when(j != last)
        def _():
            tile_sumsq(False)

        @pl.when(j == last)
        def _():
            tile_sumsq(True)
    else:
        tile_sumsq(False)


def rmse_loss(outputs, label, *, small_n_threshold=_SMALL_N_FASTPATH):
    """sqrt(mean((outputs - label)**2)), matching Loss_RMSE.forward."""
    assert outputs.shape == label.shape
    n = outputs.size
    itemsize = jnp.dtype(outputs.dtype).itemsize

    x = outputs.reshape(-1)
    y = label.reshape(-1)

    # Small-n fast path: kernel launch + the second (cross-lane) reduce
    # dominate below ~1M elements, and the kernel wants at least one full
    # (128,128)-row chunk anyway.
    if n < max(small_n_threshold, _CHUNK_ROWS * _LANES):
        d = x.astype(jnp.float32) - y.astype(jnp.float32)
        return jnp.sqrt(jnp.sum(d * d) / n)

    # Sub-lane tail (n % 128 elements): fold it with a tiny jnp reduction so
    # the kernel input reshapes to (rows, 128) with ZERO copies whenever n is
    # lane aligned (the common case; no full-array jnp.pad pass anymore).
    rem = n % _LANES
    tail_sumsq = jnp.zeros((), jnp.float32)
    if rem:
        dt = x[n - rem:].astype(jnp.float32) - y[n - rem:].astype(jnp.float32)
        tail_sumsq = jnp.sum(dt * dt)
        x = x[: n - rem]
        y = y[: n - rem]
    n_kernel = n - rem
    rows = n_kernel // _LANES           # >= 128 on this path

    x2 = x.reshape(rows, _LANES)
    y2 = y.reshape(rows, _LANES)

    # Row-tile size: ~2 MiB per input tile in the NATIVE dtype (4096 rows for
    # f32, 8192 for bf16), a multiple of the in-kernel chunk, capped so blocks
    # never exceed the array extent.  Ragged last tile handled by the mask.
    tm_cap = (_TARGET_TILE_BYTES // (_LANES * itemsize)) // _CHUNK_ROWS * _CHUNK_ROWS
    tm_cap = max(tm_cap, _CHUNK_ROWS)
    tm = min(tm_cap, (rows // _CHUNK_ROWS) * _CHUNK_ROWS)
    num_tiles = pl.cdiv(rows, tm)
    need_mask = (rows % tm) != 0        # only the last tile is ragged

    kernel = functools.partial(
        _rmse_sumsq_kernel, tm=tm, valid_rows=rows, need_mask=need_mask)

    partials = pl.pallas_call(
        kernel,
        out_shape=jax.ShapeDtypeStruct((_SUBLANES, _LANES), jnp.float32),
        grid_spec=pltpu.PrefetchScalarGridSpec(
            num_scalar_prefetch=0,
            grid=(num_tiles,),
            in_specs=[
                pl.BlockSpec((tm, _LANES), lambda j: (j, 0)),
                pl.BlockSpec((tm, _LANES), lambda j: (j, 0)),
            ],
            out_specs=pl.BlockSpec((_SUBLANES, _LANES), lambda j: (0, 0)),
        ),
        # TODO(synk): on multi-TensorCore chips (v7x) use pltpu.CORE_PARALLEL
        # (or pl.core_map) on this axis for the second HBM stream.
        compiler_params=pltpu.CompilerParams(
            dimension_semantics=("arbitrary",)),
        cost_estimate=pl.CostEstimate(
            flops=3 * n_kernel,
            transcendentals=0,
            bytes_accessed=2 * n_kernel * itemsize + _SUBLANES * _LANES * 4),
    )(x2, y2)

    # Single tiny cross-lane reduce + sqrt; the mean uses the ORIGINAL count.
    return jnp.sqrt((jnp.sum(partials) + tail_sumsq) / n)


if __name__ == "__main__":
    key = jax.random.PRNGKey(0)
    k1, k2, k3, k4, k5, k6 = jax.random.split(key, 6)

    # Primary example (HSI-like NCHW): lane-aligned -> zero-copy reshape,
    # single full tile, unmasked hot path.  small_n_threshold=0 forces the
    # Pallas kernel (the default would take the fused-XLA fast path at this
    # size).
    shape1 = (2, 32, 64, 64)
    a1 = jax.random.normal(k1, shape1, dtype=jnp.float32)
    b1 = jax.random.normal(k2, shape1, dtype=jnp.float32)
    r1 = rmse_loss(a1, b1, small_n_threshold=0)
    jax.block_until_ready(r1)
    ref1 = jnp.sqrt(jnp.mean((a1 - b1) ** 2))
    assert jnp.allclose(r1, ref1, rtol=1e-5, atol=1e-6), (r1, ref1)

    # Ragged example: n % 128 != 0 -> jnp sub-lane tail fold, multi-tile grid
    # with a masked ragged last tile and the in-kernel fori_loop chunking.
    shape2 = (3, 31, 89, 89)
    a2 = jax.random.normal(k3, shape2, dtype=jnp.float32)
    b2 = jax.random.normal(k4, shape2, dtype=jnp.float32)
    r2 = rmse_loss(a2, b2, small_n_threshold=0)
    jax.block_until_ready(r2)
    ref2 = jnp.sqrt(jnp.mean((a2 - b2) ** 2))
    assert jnp.allclose(r2, ref2, rtol=1e-5, atol=1e-6), (r2, ref2)

    # Tiny module-style example: exercises the small-n fused-XLA fast path.
    shape3 = (2, 4, 16, 16)
    a3 = jax.random.normal(k5, shape3, dtype=jnp.float32)
    b3 = jax.random.normal(k6, shape3, dtype=jnp.float32)
    r3 = rmse_loss(a3, b3)
    jax.block_until_ready(r3)
    ref3 = jnp.sqrt(jnp.mean((a3 - b3) ** 2))
    assert jnp.allclose(r3, ref3, rtol=1e-5, atol=1e-6), (r3, ref3)

    print("KERNEL_OK")
</pallas_src>

<mosaic_0001>
module attributes {stable_mosaic.version = 11 : i64} {
  func.func @_rmse_sumsq_kernel(%arg0: i32, %arg1: memref<2048x128xf32, #tpu.memory_space<vmem>>, %arg2: memref<2048x128xf32, #tpu.memory_space<vmem>>, %arg3: memref<8x128xf32, #tpu.memory_space<vmem>>) attributes {dimension_semantics = [#tpu.dimension_semantics<arbitrary>], iteration_bounds = array<i64: 1>, scalar_prefetch = 0 : i64, scratch_operands = 0 : i64, tpu.core_type = #tpu.core_type<tc>, window_params = [{transform_indices = @transform_0, window_bounds = array<i64: 2048, 128>}, {transform_indices = @transform_1, window_bounds = array<i64: 2048, 128>}, {pipeline_mode = #tpu.pipeline_mode<synchronous>, transform_indices = @transform_2, window_bounds = array<i64: 8, 128>}]} {
    %c0_i32 = arith.constant 0 : i32
    %0 = arith.cmpi eq, %arg0, %c0_i32 : i32
    %1 = arith.extui %0 : i1 to i32
    %c0_i32_0 = arith.constant 0 : i32
    %2 = arith.cmpi ne, %1, %c0_i32_0 : i32
    scf.if %2 {
      %cst_6 = arith.constant 0.000000e+00 : f32
      %9 = vector.broadcast %cst_6 : f32 to vector<8x128xf32>
      %c0_7 = arith.constant 0 : index
      %c0_8 = arith.constant 0 : index
      %10 = vector.load %arg3[%c0_7, %c0_8] : memref<8x128xf32, #tpu.memory_space<vmem>>, vector<8x128xf32>
      tpu.vector_store %arg3[%c0_7, %c0_8], %9 {strides = array<i32>} : memref<8x128xf32, #tpu.memory_space<vmem>>, vector<8x128xf32>,
    } else {
    }
    %cst = arith.constant 0.000000e+00 : f32
    %3 = vector.broadcast %cst : f32 to vector<8x128xf32>
    %c0_i32_1 = arith.constant 0 : i32
    %c16_i32 = arith.constant 16 : i32
    %4 = arith.addi %c0_i32_1, %c16_i32 : i32
    %c1_i32 = arith.constant 1 : i32
    %5 = scf.for %arg4 = %c0_i32_1 to %4 step %c1_i32 iter_args(%arg5 = %3) -> (vector<8x128xf32>)  : i32 {
      %c128_i32 = arith.constant 128 : i32
      %9 = arith.muli %arg4, %c128_i32 : i32
      %10 = tpu.assume_multiple %9, 128 : i32
      %11 = arith.index_cast %10 : i32 to index
      %c0_6 = arith.constant 0 : index
      %12 = vector.load %arg1[%11, %c0_6] : memref<2048x128xf32, #tpu.memory_space<vmem>>, vector<128x128xf32>
      %13 = arith.index_cast %10 : i32 to index
      %c0_7 = arith.constant 0 : index
      %14 = vector.load %arg2[%13, %c0_7] : memref<2048x128xf32, #tpu.memory_space<vmem>>, vector<128x128xf32>
      %15 = arith.subf %12, %14 : vector<128x128xf32>
      %16 = arith.mulf %15, %15 : vector<128x128xf32>
      %17 = vector.shape_cast %16 : vector<128x128xf32> to vector<16x8x128xf32>
      %cst_8 = arith.constant dense<0.000000e+00> : vector<8x128xf32>
      %18 = vector.multi_reduction <add>, %17, %cst_8 [0] : vector<16x8x128xf32> to vector<8x128xf32>
      %19 = arith.addf %arg5, %18 : vector<8x128xf32>
      scf.yield %19 : vector<8x128xf32>
    }
    %c16_i32_2 = arith.constant 16 : i32
    %c0 = arith.constant 0 : index
    %c0_3 = arith.constant 0 : index
    %6 = vector.load %arg3[%c0, %c0_3] : memref<8x128xf32, #tpu.memory_space<vmem>>, vector<8x128xf32>
    %7 = arith.addf %6, %5 : vector<8x128xf32>
    %c0_4 = arith.constant 0 : index
    %c0_5 = arith.constant 0 : index
    %8 = vector.load %arg3[%c0_4, %c0_5] : memref<8x128xf32, #tpu.memory_space<vmem>>, vector<8x128xf32>
    tpu.vector_store %arg3[%c0_4, %c0_5], %7 {strides = array<i32>} : memref<8x128xf32, #tpu.memory_space<vmem>>, vector<8x128xf32>,
    return
  }
  func.func @transform_0(%arg0: i32) -> (i32, i32) {
    %c0_i32 = arith.constant 0 : i32
    %c0_i32_0 = arith.constant 0 : i32
    return %arg0, %c0_i32 : i32, i32
  }
  func.func @transform_1(%arg0: i32) -> (i32, i32) {
    %c0_i32 = arith.constant 0 : i32
    %c0_i32_0 = arith.constant 0 : i32
    return %arg0, %c0_i32 : i32, i32
  }
  func.func @transform_2(%arg0: i32) -> (i32, i32) {
    %c0_i32 = arith.constant 0 : i32
    %c0_i32_0 = arith.constant 0 : i32
    %c0_i32_1 = arith.constant 0 : i32
    return %c0_i32, %c0_i32_0 : i32, i32
  }
}

</mosaic_0001>

<llo_original>
// kernel: tpu_custom_call.1
$region0: #{tpu_custom_call.1}
  #allocation0 [shape = 'u32[]', space=smem, size = 0x4, offset = 0x4, fixed_abs, tag = 'smem constant byte address 0x4 - core index']
  #allocation1 [shape = 'u32[72,128]{1,0:T(1,128)}', space=vmem, size = 0x9000, scoped, tag = 'internal scratch']
  %s0 = inlined_call_operand.hbm [shape: f32[2048,128], index: 0, kind: input, shape index: {}]
  %s1 = inlined_call_operand.hbm [shape: f32[2048,128], index: 1, kind: input, shape index: {}]
  %s2 = inlined_call_operand.hbm [shape: f32[8,128], index: 2, kind: output, shape index: {}]
  %s3 = sld [smem:[#allocation0]]
  $region37: #{tpu_custom_call.1} parent=0
    _
  %s5 = ssub.s32 1, %s3
  %s6 = scalar_select 0, %s5, %s3
  $region1: #{tpu_custom_call.1} parent=0
    #allocation2 [shape = 'u8[1048576]{0}', space=vmem, size = 0x100000, scoped, tag = 'input window, operand 0, single buffered']
    #allocation3 [shape = 's32[1]{0}', space=sflag, size = 0x4, scoped, tag = 'scoped memory for tpu_custom_call.1']
    #allocation4 [shape = 's32[1]{0}', space=sflag, size = 0x4, scoped, tag = 'scoped memory for tpu_custom_call.1']
    #allocation5 [shape = 'u8[1048576]{0}', space=vmem, size = 0x100000, scoped, tag = 'input window, operand 1, single buffered']
    #allocation6 [shape = 's32[1]{0}', space=sflag, size = 0x4, scoped, tag = 'scoped memory for tpu_custom_call.1']
    #allocation7 [shape = 'u8[4096]{0}', space=vmem, size = 0x1000, scoped, tag = 'output window, operand 0, single buffered']
    %7 = vsyncpa [#allocation3], 0
    %8 = vsyncpa [#allocation6], 0
    %9 = vsyncpa [#allocation4], 0
    // Predicated region
    $region2: #{tpu_custom_call.1} parent=1 // pred_check
      _
    $region3: #{tpu_custom_call.1} parent=1 // pred_check_branch
      %11 = sbr.rel (0) target = $region5
    $region4: #{tpu_custom_call.1} parent=1 // pred_region
      %13 = vsyncadd [#allocation3], 0
      %s14 = sshll.u32 %s0, 4
      %s15 = int_to_ptr.hbm [resolvable:$true] %s14
      %s16 = sshll.u32 [#allocation2], 4
      %s17 = int_to_ptr.vmem [resolvable:$true] %s16
      %22 = dma.hbm_to_vmem [thread:$0]  %s15, 32768, %s17, [#allocation3], 128, 128, 8
    $region5: #{tpu_custom_call.1} parent=1 // pred_fallthru
      _
    // Predicated region
    $region6: #{tpu_custom_call.1} parent=1 // pred_check
      _
    $region7: #{tpu_custom_call.1} parent=1 // pred_check_branch
      %24 = sbr.rel (0) target = $region9
    $region8: #{tpu_custom_call.1} parent=1 // pred_region
      %26 = vsyncadd [#allocation6], 0
      %s27 = sshll.u32 %s1, 4
      %s28 = int_to_ptr.hbm [resolvable:$true] %s27
      %s29 = sshll.u32 [#allocation5], 4
      %s30 = int_to_ptr.vmem [resolvable:$true] %s29
      %35 = dma.hbm_to_vmem [thread:$0]  %s28, 32768, %s30, [#allocation6], 128, 128, 8
    $region9: #{tpu_custom_call.1} parent=1 // pred_fallthru
      _
    // Predicated region
    $region10: #{tpu_custom_call.1} parent=1 // pred_check
      _
    $region11: #{tpu_custom_call.1} parent=1 // pred_check_branch
      %37 = sbr.rel (0) target = $region13
    $region12: #{tpu_custom_call.1} parent=1 // pred_region
      %39 = dma.done [#allocation3], 32768
    $region13: #{tpu_custom_call.1} parent=1 // pred_fallthru
      _
    // Predicated region
    $region14: #{tpu_custom_call.1} parent=1 // pred_check
      _
    $region15: #{tpu_custom_call.1} parent=1 // pred_check_branch
      %41 = sbr.rel (0) target = $region17
    $region16: #{tpu_custom_call.1} parent=1 // pred_region
      %43 = dma.done [#allocation6], 32768
    $region17: #{tpu_custom_call.1} parent=1 // pred_fallthru
      _
    %p44 = scmp.eq.s32.totalorder 0, 0
    // Predicated region
    $region18: #{tpu_custom_call.1} parent=1 // pred_check
      %p45 = pneg %p44
    $region19: #{tpu_custom_call.1} parent=1 // pred_check_branch
      %47 = sbr.rel (%p45) target = $region21
    $region20: #{tpu_custom_call.1} parent=1 // pred_region
      %48 = vst [vmem:[#allocation7] sm:$0xff] 0.0
    $region21: #{tpu_custom_call.1} parent=1 // pred_fallthru
      _
    loop: start=0, step=1, limit=16
    $region22: #{tpu_custom_call.1} parent=1 // loop_pre_header
      _
    $region23: #{tpu_custom_call.1} parent=1 // loop_header
      %s50 = sphi 0, %s54
      %p51 = scmp.ge.s32.totalorder %s50, 16
      %v55 = vphi 0.0, %v138
    $region24: #{tpu_custom_call.1} parent=1 // loop_header_branch
      %53 = sbr.rel (%p51) target = $region28
    $region25: #{tpu_custom_call.1} parent=1 // loop_body
      %s56 = smul.u32 %s50, 128
      %s57 = scalar_lea.vmem [#allocation2], %s56
      %v58 = vld [vmem:[%s57] sm:$0xff]
      %v59 = vld [vmem:[%s57 + $0x8] sm:$0xff]
      %v60 = vld [vmem:[%s57 + $0x10] sm:$0xff]
      %v61 = vld [vmem:[%s57 + $0x18] sm:$0xff]
      %v62 = vld [vmem:[%s57 + $0x20] sm:$0xff]
      %v63 = vld [vmem:[%s57 + $0x28] sm:$0xff]
      %v64 = vld [vmem:[%s57 + $0x30] sm:$0xff]
      %v65 = vld [vmem:[%s57 + $0x38] sm:$0xff]
      %v66 = vld [vmem:[%s57 + $0x40] sm:$0xff]
      %v67 = vld [vmem:[%s57 + $0x48] sm:$0xff]
      %v68 = vld [vmem:[%s57 + $0x50] sm:$0xff]
      %v69 = vld [vmem:[%s57 + $0x58] sm:$0xff]
      %v70 = vld [vmem:[%s57 + $0x60] sm:$0xff]
      %v71 = vld [vmem:[%s57 + $0x68] sm:$0xff]
      %v72 = vld [vmem:[%s57 + $0x70] sm:$0xff]
      %v73 = vld [vmem:[%s57 + $0x78] sm:$0xff]
      %s74 = scalar_lea.vmem [#allocation5], %s56
      %v75 = vld [vmem:[%s74] sm:$0xff]
      %v76 = vld [vmem:[%s74 + $0x8] sm:$0xff]
      %v77 = vld [vmem:[%s74 + $0x10] sm:$0xff]
      %v78 = vld [vmem:[%s74 + $0x18] sm:$0xff]
      %v79 = vld [vmem:[%s74 + $0x20] sm:$0xff]
      %v80 = vld [vmem:[%s74 + $0x28] sm:$0xff]
      %v81 = vld [vmem:[%s74 + $0x30] sm:$0xff]
      %v82 = vld [vmem:[%s74 + $0x38] sm:$0xff]
      %v83 = vld [vmem:[%s74 + $0x40] sm:$0xff]
      %v84 = vld [vmem:[%s74 + $0x48] sm:$0xff]
      %v85 = vld [vmem:[%s74 + $0x50] sm:$0xff]
      %v86 = vld [vmem:[%s74 + $0x58] sm:$0xff]
      %v87 = vld [vmem:[%s74 + $0x60] sm:$0xff]
      %v88 = vld [vmem:[%s74 + $0x68] sm:$0xff]
      %v89 = vld [vmem:[%s74 + $0x70] sm:$0xff]
      %v90 = vld [vmem:[%s74 + $0x78] sm:$0xff]
      %v91 = vsub.f32 %v58, %v75
      %v92 = vsub.f32 %v59, %v76
      %v93 = vsub.f32 %v60, %v77
      %v94 = vsub.f32 %v61, %v78
      %v95 = vsub.f32 %v62, %v79
      %v96 = vsub.f32 %v63, %v80
      %v97 = vsub.f32 %v64, %v81
      %v98 = vsub.f32 %v65, %v82
      %v99 = vsub.f32 %v66, %v83
      %v100 = vsub.f32 %v67, %v84
      %v101 = vsub.f32 %v68, %v85
      %v102 = vsub.f32 %v69, %v86
      %v103 = vsub.f32 %v70, %v87
      %v104 = vsub.f32 %v71, %v88
      %v105 = vsub.f32 %v72, %v89
      %v106 = vsub.f32 %v73, %v90
      %v107 = vmul.f32 %v91, %v91
      %v108 = vmul.f32 %v92, %v92
      %v109 = vmul.f32 %v93, %v93
      %v110 = vmul.f32 %v94, %v94
      %v111 = vmul.f32 %v95, %v95
      %v112 = vmul.f32 %v96, %v96
      %v113 = vmul.f32 %v97, %v97
      %v114 = vmul.f32 %v98, %v98
      %v115 = vmul.f32 %v99, %v99
      %v116 = vmul.f32 %v100, %v100
      %v117 = vmul.f32 %v101, %v101
      %v118 = vmul.f32 %v102, %v102
      %v119 = vmul.f32 %v103, %v103
      %v120 = vmul.f32 %v104, %v104
      %v121 = vmul.f32 %v105, %v105
      %v122 = vmul.f32 %v106, %v106
      %v123 = vadd.f32 %v107, %v108
      %v124 = vadd.f32 %v123, %v109
      %v125 = vadd.f32 %v124, %v110
      %v126 = vadd.f32 %v125, %v111
      %v127 = vadd.f32 %v126, %v112
      %v128 = vadd.f32 %v127, %v113
      %v129 = vadd.f32 %v128, %v114
      %v130 = vadd.f32 %v129, %v115
      %v131 = vadd.f32 %v130, %v116
      %v132 = vadd.f32 %v131, %v117
      %v133 = vadd.f32 %v132, %v118
      %v134 = vadd.f32 %v133, %v119
      %v135 = vadd.f32 %v134, %v120
      %v136 = vadd.f32 %v135, %v121
      %v137 = vadd.f32 %v136, %v122
      %v138 = vadd.f32 %v55, %v137
    $region26: #{tpu_custom_call.1} parent=1 // loop_footer
      %s54 = sadd.s32 1, %s50
    $region27: #{tpu_custom_call.1} parent=1 // loop_footer_branch
      %49 = sbr.rel target = $region23
    $region28: #{tpu_custom_call.1} parent=1 // loop_exit
      _
    %v139 = vld [vmem:[#allocation7] sm:$0xff]
    %v140 = vadd.f32 %v139, %v55
    %141 = vst [vmem:[#allocation7] sm:$0xff] %v140
    // Predicated region
    $region29: #{tpu_custom_call.1} parent=1 // pred_check
      _
    $region30: #{tpu_custom_call.1} parent=1 // pred_check_branch
      %143 = sbr.rel (0) target = $region32
    $region31: #{tpu_custom_call.1} parent=1 // pred_region
      %145 = vsyncadd [#allocation4], 0
      %s147 = sshll.u32 [#allocation7], 4
      %s148 = int_to_ptr.vmem [resolvable:$true] %s147
      %s149 = sshll.u32 %s2, 4
      %s150 = int_to_ptr.hbm [resolvable:$true] %s149
      %152 = dma.vmem_to_hbm [thread:$0]  %s148, 128, %s150, [#allocation4]
    $region32: #{tpu_custom_call.1} parent=1 // pred_fallthru
      _
    // Predicated region
    $region33: #{tpu_custom_call.1} parent=1 // pred_check
      _
    $region34: #{tpu_custom_call.1} parent=1 // pred_check_branch
      %154 = sbr.rel (0) target = $region36
    $region35: #{tpu_custom_call.1} parent=1 // pred_region
      %156 = dma.done [#allocation4], 128
    $region36: #{tpu_custom_call.1} parent=1 // pred_fallthru
      _
    %157 = vsyncpa [#allocation3], 1
    %158 = vsyncpa [#allocation6], 1
    %159 = vsyncpa [#allocation4], 1

</llo_original>
